<compile_context>
chip_gen: v5e
topology: v5e:2x2
jax: 0.10.0
libtpu: 0.0.40
codegen_flags: <defaults>
</compile_context>

<pallas_src>
import functools
import math

import jax
import jax.numpy as jnp
from jax.experimental import pallas as pl
from jax.experimental.pallas import tpu as pltpu


def mha_kernel(xq_ref, xk_ref, xv_ref,
               wq_ref, wk_ref, wv_ref, wfc_ref,
               gamma_ref, beta_ref,
               out_ref, attn_ref,
               *, n_head, d_k, d_v, batch, len_q, len_k, eps):
    """Whole forward pass in one invocation.

    Shapes:
      xq_ref / xk_ref / xv_ref : (B*Lq, Dm) / (B*Lk, Dm) / (B*Lk, Dm)   unreplicated
      wq_ref / wk_ref          : (Dm, H*Dk)   packed; wq pre-scaled by 1/sqrt(d_k)
      wv_ref                   : (Dm, H*Dv)
      wfc_ref                  : (H*Dv, Dm)
      gamma_ref / beta_ref     : (1, Dm)
      out_ref                  : (B*Lq, Dm)
      attn_ref                 : (H*B, Lq, Lk)   PyTorch head-major layout
    """
    xq = xq_ref[...]                                                 # (B*Lq, Dm)
    xk = xk_ref[...]
    xv = xv_ref[...]

    # Packed Q/K/V projections: one 2-D MXU matmul each (K = Dm), scale folded in Wq.
    q_all = jnp.dot(xq, wq_ref[...], preferred_element_type=jnp.float32)   # (B*Lq, H*Dk)
    k_all = jnp.dot(xk, wk_ref[...], preferred_element_type=jnp.float32)   # (B*Lk, H*Dk)
    v_all = jnp.dot(xv, wv_ref[...], preferred_element_type=jnp.float32)   # (B*Lk, H*Dv)

    # Per-head attention (static, unrolled). Head split = static lane slice of the
    # packed projection; batch split = leading-dim reshape (last dim untouched).
    o_heads = []
    for h in range(n_head):
        q_h = q_all[:, h * d_k:(h + 1) * d_k].reshape(batch, len_q, d_k)
        k_h = k_all[:, h * d_k:(h + 1) * d_k].reshape(batch, len_k, d_k)
        v_h = v_all[:, h * d_v:(h + 1) * d_v].reshape(batch, len_k, d_v)

        # Scores contract the feature axis directly (no explicit k^T relayout).
        s = jnp.einsum('bqd,bkd->bqk', q_h, k_h,
                       preferred_element_type=jnp.float32)           # (B, Lq, Lk)

        # Softmax over the key axis (PyTorch Softmax(dim=2)); eval dropout == identity.
        m = jnp.max(s, axis=-1, keepdims=True)
        e = jnp.exp(s - m)
        denom = jnp.sum(e, axis=-1, keepdims=True)
        r = pl.reciprocal(denom, approx=True)                        # EUP slot
        r = r * (2.0 - denom * r)                                    # Newton -> ~f32 exact
        p = e * r

        attn_ref[h * batch:(h + 1) * batch] = p                      # head-major (H*B, Lq, Lk)

        o_heads.append(jnp.einsum('bqk,bkd->bqd', p, v_h,
                                  preferred_element_type=jnp.float32))  # (B, Lq, Dv)

    # Concatenate heads along the lane axis (matches PyTorch permute(1,2,0,3) layout)
    # and fuse the head reduction into a single K = H*Dv output-projection matmul.
    o_cat = jnp.concatenate(o_heads, axis=-1)                        # (B, Lq, H*Dv)
    o2 = o_cat.reshape(batch * len_q, n_head * d_v)                  # (B*Lq, H*Dv)
    proj = jnp.dot(o2, wfc_ref[...], preferred_element_type=jnp.float32)  # (B*Lq, Dm)

    # Residual (original, unreplicated q) + LayerNorm over the feature axis (f32 math).
    y = proj + xq
    mean = jnp.mean(y, axis=-1, keepdims=True)
    var = jnp.mean((y - mean) ** 2, axis=-1, keepdims=True)
    y_norm = (y - mean) * jax.lax.rsqrt(var + eps)
    out_ref[...] = y_norm * gamma_ref[...] + beta_ref[...]


def pack_params(params, *, d_k):
    """One-time parameter packing (call at parameter-load time, NOT per forward).

    Only host-side transform needed for the packed-matmul kernel: fold 1/sqrt(d_k)
    into Wq. Weights are otherwise consumed exactly as stored ([in, out] layout),
    with no per-head reshape/transpose and no per-batch replication.
    """
    wq, wk, wv, wfc, gamma, beta = params
    scale = jnp.float32(1.0 / math.sqrt(d_k))
    return (wq * scale, wk, wv, wfc, gamma, beta)


def multi_head_attention(q, k, v, packed_params, *, n_head, d_k, d_v, eps=1e-5):
    """q, k, v: (B, L, d_model) float32. packed_params from pack_params().

    Returns (output [B, Lq, d_model], attn [n_head*B, Lq, Lk])."""
    B, Lq, Dm = q.shape
    _, Lk, _ = k.shape
    wq_p, wk_p, wv_p, wfc_p, gamma, beta = packed_params

    # Free contiguous reshapes; no replication, no transpose, no per-call repacking.
    xq2 = q.reshape(B * Lq, Dm)
    xk2 = k.reshape(B * Lk, Dm)
    xv2 = v.reshape(B * Lk, Dm)

    kernel = functools.partial(mha_kernel, n_head=n_head, d_k=d_k, d_v=d_v,
                               batch=B, len_q=Lq, len_k=Lk, eps=eps)

    full2 = lambda i: (0, 0)
    full3 = lambda i: (0, 0, 0)

    out2, attn = pl.pallas_call(
        kernel,
        out_shape=(
            jax.ShapeDtypeStruct((B * Lq, Dm), jnp.float32),
            jax.ShapeDtypeStruct((n_head * B, Lq, Lk), jnp.float32),
        ),
        grid_spec=pltpu.PrefetchScalarGridSpec(
            num_scalar_prefetch=0,
            grid=(1,),
            in_specs=[
                pl.BlockSpec(xq2.shape, full2),
                pl.BlockSpec(xk2.shape, full2),
                pl.BlockSpec(xv2.shape, full2),
                pl.BlockSpec(wq_p.shape, full2),
                pl.BlockSpec(wk_p.shape, full2),
                pl.BlockSpec(wv_p.shape, full2),
                pl.BlockSpec(wfc_p.shape, full2),
                pl.BlockSpec(gamma.shape, full2),
                pl.BlockSpec(beta.shape, full2),
            ],
            out_specs=[
                pl.BlockSpec((B * Lq, Dm), full2),
                pl.BlockSpec((n_head * B, Lq, Lk), full3),
            ],
        ),
        compiler_params=pltpu.CompilerParams(dimension_semantics=("arbitrary",)),
    )(xq2, xk2, xv2, wq_p, wk_p, wv_p, wfc_p, gamma, beta)

    # attn already matches PyTorch's (n_head*B, Lq, Lk) head-major layout.
    return out2.reshape(B, Lq, Dm), attn


def reference_mha(q, k, v, params, *, n_head, d_k, d_v, eps=1e-5):
    """Pure-JAX reference mirroring the PyTorch forward (eval mode)."""
    wq, wk, wv, wfc, gamma, beta = params
    B, Lq, Dm = q.shape
    Lk = k.shape[1]
    residual = q
    qp = (q @ wq).reshape(B, Lq, n_head, d_k)
    kp = (k @ wk).reshape(B, Lk, n_head, d_k)
    vp = (v @ wv).reshape(B, Lk, n_head, d_v)
    qh = jnp.transpose(qp, (2, 0, 1, 3)).reshape(-1, Lq, d_k)
    kh = jnp.transpose(kp, (2, 0, 1, 3)).reshape(-1, Lk, d_k)
    vh = jnp.transpose(vp, (2, 0, 1, 3)).reshape(-1, Lk, d_v)
    scores = jnp.einsum('bqd,bkd->bqk', qh, kh) / jnp.sqrt(jnp.float32(d_k))
    attn = jax.nn.softmax(scores, axis=-1)
    o = jnp.einsum('bqk,bkd->bqd', attn, vh)
    o = o.reshape(n_head, B, Lq, d_v)
    o = jnp.transpose(o, (1, 2, 0, 3)).reshape(B, Lq, n_head * d_v)
    o = o @ wfc
    y = o + residual
    mean = jnp.mean(y, axis=-1, keepdims=True)
    var = jnp.mean((y - mean) ** 2, axis=-1, keepdims=True)
    out = (y - mean) / jnp.sqrt(var + eps) * gamma[0] + beta[0]
    return out, attn


if __name__ == "__main__":
    # Small shapes consistent with the module.
    B, L, d_model = 2, 8, 32
    n_head, d_k, d_v = 4, 8, 8

    key = jax.random.PRNGKey(0)
    k_q, k_k, k_v, k_wq, k_wk, k_wv, k_fc = jax.random.split(key, 7)

    q = jax.random.normal(k_q, (B, L, d_model), jnp.float32)
    k = jax.random.normal(k_k, (B, L, d_model), jnp.float32)
    v = jax.random.normal(k_v, (B, L, d_model), jnp.float32)

    # Deterministic parameter init matching the PyTorch __init__ statistics.
    # (Linear weights stored here already transposed: [in_features, out_features].)
    std_qk = math.sqrt(2.0 / (d_model + d_k))
    std_v = math.sqrt(2.0 / (d_model + d_v))
    wq = std_qk * jax.random.normal(k_wq, (d_model, n_head * d_k), jnp.float32)
    wk = std_qk * jax.random.normal(k_wk, (d_model, n_head * d_k), jnp.float32)
    wv = std_v * jax.random.normal(k_wv, (d_model, n_head * d_v), jnp.float32)
    xavier_std = math.sqrt(2.0 / (n_head * d_v + d_model))
    wfc = xavier_std * jax.random.normal(k_fc, (n_head * d_v, d_model), jnp.float32)
    gamma = jnp.ones((1, d_model), jnp.float32)   # LayerNorm default init
    beta = jnp.zeros((1, d_model), jnp.float32)

    params = (wq, wk, wv, wfc, gamma, beta)
    packed = pack_params(params, d_k=d_k)         # one-time, load-time packing

    out, attn = multi_head_attention(q, k, v, packed, n_head=n_head, d_k=d_k, d_v=d_v)
    jax.block_until_ready((out, attn))

    out_ref, attn_ref = reference_mha(q, k, v, params, n_head=n_head, d_k=d_k, d_v=d_v)
    assert jnp.allclose(out, out_ref, atol=1e-4, rtol=1e-4), "output mismatch"
    assert jnp.allclose(attn, attn_ref, atol=1e-5, rtol=1e-4), "attn mismatch"

    print("KERNEL_OK")
</pallas_src>

<mosaic_0001>
module attributes {stable_mosaic.version = 11 : i64} {
  func.func @mha_kernel(%arg0: i32, %arg1: memref<16x32xf32, #tpu.memory_space<vmem>>, %arg2: memref<16x32xf32, #tpu.memory_space<vmem>>, %arg3: memref<16x32xf32, #tpu.memory_space<vmem>>, %arg4: memref<32x32xf32, #tpu.memory_space<vmem>>, %arg5: memref<32x32xf32, #tpu.memory_space<vmem>>, %arg6: memref<32x32xf32, #tpu.memory_space<vmem>>, %arg7: memref<32x32xf32, #tpu.memory_space<vmem>>, %arg8: memref<1x32xf32, #tpu.memory_space<vmem>>, %arg9: memref<1x32xf32, #tpu.memory_space<vmem>>, %arg10: memref<16x32xf32, #tpu.memory_space<vmem>>, %arg11: memref<8x8x8xf32, #tpu.memory_space<vmem>>) attributes {dimension_semantics = [#tpu.dimension_semantics<arbitrary>], iteration_bounds = array<i64: 1>, scalar_prefetch = 0 : i64, scratch_operands = 0 : i64, tpu.core_type = #tpu.core_type<tc>, window_params = [{pipeline_mode = #tpu.pipeline_mode<synchronous>, transform_indices = @transform_0, window_bounds = array<i64: 16, 32>}, {pipeline_mode = #tpu.pipeline_mode<synchronous>, transform_indices = @transform_1, window_bounds = array<i64: 16, 32>}, {pipeline_mode = #tpu.pipeline_mode<synchronous>, transform_indices = @transform_2, window_bounds = array<i64: 16, 32>}, {pipeline_mode = #tpu.pipeline_mode<synchronous>, transform_indices = @transform_3, window_bounds = array<i64: 32, 32>}, {pipeline_mode = #tpu.pipeline_mode<synchronous>, transform_indices = @transform_4, window_bounds = array<i64: 32, 32>}, {pipeline_mode = #tpu.pipeline_mode<synchronous>, transform_indices = @transform_5, window_bounds = array<i64: 32, 32>}, {pipeline_mode = #tpu.pipeline_mode<synchronous>, transform_indices = @transform_6, window_bounds = array<i64: 32, 32>}, {pipeline_mode = #tpu.pipeline_mode<synchronous>, transform_indices = @transform_7, window_bounds = array<i64: 1, 32>}, {pipeline_mode = #tpu.pipeline_mode<synchronous>, transform_indices = @transform_8, window_bounds = array<i64: 1, 32>}, {pipeline_mode = #tpu.pipeline_mode<synchronous>, transform_indices = @transform_9, window_bounds = array<i64: 16, 32>}, {pipeline_mode = #tpu.pipeline_mode<synchronous>, transform_indices = @transform_10, window_bounds = array<i64: 8, 8, 8>}]} {
    %c0 = arith.constant 0 : index
    %c0_0 = arith.constant 0 : index
    %0 = vector.load %arg1[%c0, %c0_0] : memref<16x32xf32, #tpu.memory_space<vmem>>, vector<16x32xf32>
    %c0_1 = arith.constant 0 : index
    %c0_2 = arith.constant 0 : index
    %1 = vector.load %arg2[%c0_1, %c0_2] : memref<16x32xf32, #tpu.memory_space<vmem>>, vector<16x32xf32>
    %c0_3 = arith.constant 0 : index
    %c0_4 = arith.constant 0 : index
    %2 = vector.load %arg3[%c0_3, %c0_4] : memref<16x32xf32, #tpu.memory_space<vmem>>, vector<16x32xf32>
    %c0_5 = arith.constant 0 : index
    %c0_6 = arith.constant 0 : index
    %3 = vector.load %arg4[%c0_5, %c0_6] : memref<32x32xf32, #tpu.memory_space<vmem>>, vector<32x32xf32>
    %cst = arith.constant dense<0.000000e+00> : vector<16x32xf32>
    %4 = tpu.matmul %0, %3, %cst {dimension_numbers = #tpu.dot_dimension_numbers<[1], [0], [0], [1], [0, 0, 1, 1], [], []>} : vector<16x32xf32>, vector<32x32xf32>, vector<16x32xf32> -> vector<16x32xf32>
    %c0_7 = arith.constant 0 : index
    %c0_8 = arith.constant 0 : index
    %5 = vector.load %arg5[%c0_7, %c0_8] : memref<32x32xf32, #tpu.memory_space<vmem>>, vector<32x32xf32>
    %cst_9 = arith.constant dense<0.000000e+00> : vector<16x32xf32>
    %6 = tpu.matmul %1, %5, %cst_9 {dimension_numbers = #tpu.dot_dimension_numbers<[1], [0], [0], [1], [0, 0, 1, 1], [], []>} : vector<16x32xf32>, vector<32x32xf32>, vector<16x32xf32> -> vector<16x32xf32>
    %c0_10 = arith.constant 0 : index
    %c0_11 = arith.constant 0 : index
    %7 = vector.load %arg6[%c0_10, %c0_11] : memref<32x32xf32, #tpu.memory_space<vmem>>, vector<32x32xf32>
    %cst_12 = arith.constant dense<0.000000e+00> : vector<16x32xf32>
    %8 = tpu.matmul %2, %7, %cst_12 {dimension_numbers = #tpu.dot_dimension_numbers<[1], [0], [0], [1], [0, 0, 1, 1], [], []>} : vector<16x32xf32>, vector<32x32xf32>, vector<16x32xf32> -> vector<16x32xf32>
    %9 = vector.extract_strided_slice %4 {offsets = [0, 0], sizes = [16, 8], strides = [1, 1]} : vector<16x32xf32> to vector<16x8xf32>
    %10 = vector.shape_cast %9 : vector<16x8xf32> to vector<2x8x8xf32>
    %11 = vector.extract_strided_slice %6 {offsets = [0, 0], sizes = [16, 8], strides = [1, 1]} : vector<16x32xf32> to vector<16x8xf32>
    %12 = vector.shape_cast %11 : vector<16x8xf32> to vector<2x8x8xf32>
    %13 = vector.extract_strided_slice %8 {offsets = [0, 0], sizes = [16, 8], strides = [1, 1]} : vector<16x32xf32> to vector<16x8xf32>
    %14 = vector.shape_cast %13 : vector<16x8xf32> to vector<2x8x8xf32>
    "tpu.trace_start"() <{level = 10 : i32, message = "bqd,bkd->bqk"}> : () -> ()
    %cst_13 = arith.constant dense<0.000000e+00> : vector<2x8x8xf32>
    %15 = tpu.matmul %10, %12, %cst_13 {dimension_numbers = #tpu.dot_dimension_numbers<[2], [2], [1], [1], [0, 0, 0, 1, 1, 1], [0], [0]>} : vector<2x8x8xf32>, vector<2x8x8xf32>, vector<2x8x8xf32> -> vector<2x8x8xf32>
    "tpu.trace_stop"() : () -> ()
    %cst_14 = arith.constant dense<0xFF800000> : vector<2x8xf32>
    %16 = vector.multi_reduction <maximumf>, %15, %cst_14 [2] : vector<2x8x8xf32> to vector<2x8xf32>
    %17 = vector.shape_cast %16 : vector<2x8xf32> to vector<2x8x1xf32>
    %18 = vector.broadcast %17 : vector<2x8x1xf32> to vector<2x8x8xf32>
    %19 = arith.subf %15, %18 : vector<2x8x8xf32>
    %20 = math.exp %19 : vector<2x8x8xf32>
    %cst_15 = arith.constant dense<0.000000e+00> : vector<2x8xf32>
    %21 = vector.multi_reduction <add>, %20, %cst_15 [2] : vector<2x8x8xf32> to vector<2x8xf32>
    %22 = vector.shape_cast %21 : vector<2x8xf32> to vector<2x8x1xf32>
    %23 = tpu.reciprocal %22 {approx = true} : vector<2x8x1xf32> -> vector<2x8x1xf32>
    %24 = arith.mulf %22, %23 : vector<2x8x1xf32>
    %cst_16 = arith.constant 2.000000e+00 : f32
    %25 = vector.broadcast %cst_16 : f32 to vector<2x8x1xf32>
    %26 = arith.subf %25, %24 : vector<2x8x1xf32>
    %27 = arith.mulf %23, %26 : vector<2x8x1xf32>
    %28 = vector.broadcast %27 : vector<2x8x1xf32> to vector<2x8x8xf32>
    %29 = arith.mulf %20, %28 : vector<2x8x8xf32>
    %c0_17 = arith.constant 0 : index
    %c0_18 = arith.constant 0 : index
    %c0_19 = arith.constant 0 : index
    %30 = vector.load %arg11[%c0_17, %c0_18, %c0_19] : memref<8x8x8xf32, #tpu.memory_space<vmem>>, vector<2x8x8xf32>
    tpu.vector_store %arg11[%c0_17, %c0_18, %c0_19], %29 {strides = array<i32>} : memref<8x8x8xf32, #tpu.memory_space<vmem>>, vector<2x8x8xf32>,
    "tpu.trace_start"() <{level = 10 : i32, message = "bqk,bkd->bqd"}> : () -> ()
    %cst_20 = arith.constant dense<0.000000e+00> : vector<2x8x8xf32>
    %31 = tpu.matmul %29, %14, %cst_20 {dimension_numbers = #tpu.dot_dimension_numbers<[2], [1], [1], [2], [0, 0, 0, 1, 1, 2], [0], [0]>} : vector<2x8x8xf32>, vector<2x8x8xf32>, vector<2x8x8xf32> -> vector<2x8x8xf32>
    "tpu.trace_stop"() : () -> ()
    %32 = vector.extract_strided_slice %4 {offsets = [0, 8], sizes = [16, 8], strides = [1, 1]} : vector<16x32xf32> to vector<16x8xf32>
    %33 = vector.shape_cast %32 : vector<16x8xf32> to vector<2x8x8xf32>
    %34 = vector.extract_strided_slice %6 {offsets = [0, 8], sizes = [16, 8], strides = [1, 1]} : vector<16x32xf32> to vector<16x8xf32>
    %35 = vector.shape_cast %34 : vector<16x8xf32> to vector<2x8x8xf32>
    %36 = vector.extract_strided_slice %8 {offsets = [0, 8], sizes = [16, 8], strides = [1, 1]} : vector<16x32xf32> to vector<16x8xf32>
    %37 = vector.shape_cast %36 : vector<16x8xf32> to vector<2x8x8xf32>
    "tpu.trace_start"() <{level = 10 : i32, message = "bqd,bkd->bqk"}> : () -> ()
    %cst_21 = arith.constant dense<0.000000e+00> : vector<2x8x8xf32>
    %38 = tpu.matmul %33, %35, %cst_21 {dimension_numbers = #tpu.dot_dimension_numbers<[2], [2], [1], [1], [0, 0, 0, 1, 1, 1], [0], [0]>} : vector<2x8x8xf32>, vector<2x8x8xf32>, vector<2x8x8xf32> -> vector<2x8x8xf32>
    "tpu.trace_stop"() : () -> ()
    %cst_22 = arith.constant dense<0xFF800000> : vector<2x8xf32>
    %39 = vector.multi_reduction <maximumf>, %38, %cst_22 [2] : vector<2x8x8xf32> to vector<2x8xf32>
    %40 = vector.shape_cast %39 : vector<2x8xf32> to vector<2x8x1xf32>
    %41 = vector.broadcast %40 : vector<2x8x1xf32> to vector<2x8x8xf32>
    %42 = arith.subf %38, %41 : vector<2x8x8xf32>
    %43 = math.exp %42 : vector<2x8x8xf32>
    %cst_23 = arith.constant dense<0.000000e+00> : vector<2x8xf32>
    %44 = vector.multi_reduction <add>, %43, %cst_23 [2] : vector<2x8x8xf32> to vector<2x8xf32>
    %45 = vector.shape_cast %44 : vector<2x8xf32> to vector<2x8x1xf32>
    %46 = tpu.reciprocal %45 {approx = true} : vector<2x8x1xf32> -> vector<2x8x1xf32>
    %47 = arith.mulf %45, %46 : vector<2x8x1xf32>
    %cst_24 = arith.constant 2.000000e+00 : f32
    %48 = vector.broadcast %cst_24 : f32 to vector<2x8x1xf32>
    %49 = arith.subf %48, %47 : vector<2x8x1xf32>
    %50 = arith.mulf %46, %49 : vector<2x8x1xf32>
    %51 = vector.broadcast %50 : vector<2x8x1xf32> to vector<2x8x8xf32>
    %52 = arith.mulf %43, %51 : vector<2x8x8xf32>
    %c2 = arith.constant 2 : index
    %c0_25 = arith.constant 0 : index
    %c0_26 = arith.constant 0 : index
    %53 = vector.load %arg11[%c2, %c0_25, %c0_26] : memref<8x8x8xf32, #tpu.memory_space<vmem>>, vector<2x8x8xf32>
    tpu.vector_store %arg11[%c2, %c0_25, %c0_26], %52 {strides = array<i32>} : memref<8x8x8xf32, #tpu.memory_space<vmem>>, vector<2x8x8xf32>,
    "tpu.trace_start"() <{level = 10 : i32, message = "bqk,bkd->bqd"}> : () -> ()
    %cst_27 = arith.constant dense<0.000000e+00> : vector<2x8x8xf32>
    %54 = tpu.matmul %52, %37, %cst_27 {dimension_numbers = #tpu.dot_dimension_numbers<[2], [1], [1], [2], [0, 0, 0, 1, 1, 2], [0], [0]>} : vector<2x8x8xf32>, vector<2x8x8xf32>, vector<2x8x8xf32> -> vector<2x8x8xf32>
    "tpu.trace_stop"() : () -> ()
    %55 = vector.extract_strided_slice %4 {offsets = [0, 16], sizes = [16, 8], strides = [1, 1]} : vector<16x32xf32> to vector<16x8xf32>
    %56 = vector.shape_cast %55 : vector<16x8xf32> to vector<2x8x8xf32>
    %57 = vector.extract_strided_slice %6 {offsets = [0, 16], sizes = [16, 8], strides = [1, 1]} : vector<16x32xf32> to vector<16x8xf32>
    %58 = vector.shape_cast %57 : vector<16x8xf32> to vector<2x8x8xf32>
    %59 = vector.extract_strided_slice %8 {offsets = [0, 16], sizes = [16, 8], strides = [1, 1]} : vector<16x32xf32> to vector<16x8xf32>
    %60 = vector.shape_cast %59 : vector<16x8xf32> to vector<2x8x8xf32>
    "tpu.trace_start"() <{level = 10 : i32, message = "bqd,bkd->bqk"}> : () -> ()
    %cst_28 = arith.constant dense<0.000000e+00> : vector<2x8x8xf32>
    %61 = tpu.matmul %56, %58, %cst_28 {dimension_numbers = #tpu.dot_dimension_numbers<[2], [2], [1], [1], [0, 0, 0, 1, 1, 1], [0], [0]>} : vector<2x8x8xf32>, vector<2x8x8xf32>, vector<2x8x8xf32> -> vector<2x8x8xf32>
    "tpu.trace_stop"() : () -> ()
    %cst_29 = arith.constant dense<0xFF800000> : vector<2x8xf32>
    %62 = vector.multi_reduction <maximumf>, %61, %cst_29 [2] : vector<2x8x8xf32> to vector<2x8xf32>
    %63 = vector.shape_cast %62 : vector<2x8xf32> to vector<2x8x1xf32>
    %64 = vector.broadcast %63 : vector<2x8x1xf32> to vector<2x8x8xf32>
    %65 = arith.subf %61, %64 : vector<2x8x8xf32>
    %66 = math.exp %65 : vector<2x8x8xf32>
    %cst_30 = arith.constant dense<0.000000e+00> : vector<2x8xf32>
    %67 = vector.multi_reduction <add>, %66, %cst_30 [2] : vector<2x8x8xf32> to vector<2x8xf32>
    %68 = vector.shape_cast %67 : vector<2x8xf32> to vector<2x8x1xf32>
    %69 = tpu.reciprocal %68 {approx = true} : vector<2x8x1xf32> -> vector<2x8x1xf32>
    %70 = arith.mulf %68, %69 : vector<2x8x1xf32>
    %cst_31 = arith.constant 2.000000e+00 : f32
    %71 = vector.broadcast %cst_31 : f32 to vector<2x8x1xf32>
    %72 = arith.subf %71, %70 : vector<2x8x1xf32>
    %73 = arith.mulf %69, %72 : vector<2x8x1xf32>
    %74 = vector.broadcast %73 : vector<2x8x1xf32> to vector<2x8x8xf32>
    %75 = arith.mulf %66, %74 : vector<2x8x8xf32>
    %c4 = arith.constant 4 : index
    %c0_32 = arith.constant 0 : index
    %c0_33 = arith.constant 0 : index
    %76 = vector.load %arg11[%c4, %c0_32, %c0_33] : memref<8x8x8xf32, #tpu.memory_space<vmem>>, vector<2x8x8xf32>
    tpu.vector_store %arg11[%c4, %c0_32, %c0_33], %75 {strides = array<i32>} : memref<8x8x8xf32, #tpu.memory_space<vmem>>, vector<2x8x8xf32>,
    "tpu.trace_start"() <{level = 10 : i32, message = "bqk,bkd->bqd"}> : () -> ()
    %cst_34 = arith.constant dense<0.000000e+00> : vector<2x8x8xf32>
    %77 = tpu.matmul %75, %60, %cst_34 {dimension_numbers = #tpu.dot_dimension_numbers<[2], [1], [1], [2], [0, 0, 0, 1, 1, 2], [0], [0]>} : vector<2x8x8xf32>, vector<2x8x8xf32>, vector<2x8x8xf32> -> vector<2x8x8xf32>
    "tpu.trace_stop"() : () -> ()
    %78 = vector.extract_strided_slice %4 {offsets = [0, 24], sizes = [16, 8], strides = [1, 1]} : vector<16x32xf32> to vector<16x8xf32>
    %79 = vector.shape_cast %78 : vector<16x8xf32> to vector<2x8x8xf32>
    %80 = vector.extract_strided_slice %6 {offsets = [0, 24], sizes = [16, 8], strides = [1, 1]} : vector<16x32xf32> to vector<16x8xf32>
    %81 = vector.shape_cast %80 : vector<16x8xf32> to vector<2x8x8xf32>
    %82 = vector.extract_strided_slice %8 {offsets = [0, 24], sizes = [16, 8], strides = [1, 1]} : vector<16x32xf32> to vector<16x8xf32>
    %83 = vector.shape_cast %82 : vector<16x8xf32> to vector<2x8x8xf32>
    "tpu.trace_start"() <{level = 10 : i32, message = "bqd,bkd->bqk"}> : () -> ()
    %cst_35 = arith.constant dense<0.000000e+00> : vector<2x8x8xf32>
    %84 = tpu.matmul %79, %81, %cst_35 {dimension_numbers = #tpu.dot_dimension_numbers<[2], [2], [1], [1], [0, 0, 0, 1, 1, 1], [0], [0]>} : vector<2x8x8xf32>, vector<2x8x8xf32>, vector<2x8x8xf32> -> vector<2x8x8xf32>
    "tpu.trace_stop"() : () -> ()
    %cst_36 = arith.constant dense<0xFF800000> : vector<2x8xf32>
    %85 = vector.multi_reduction <maximumf>, %84, %cst_36 [2] : vector<2x8x8xf32> to vector<2x8xf32>
    %86 = vector.shape_cast %85 : vector<2x8xf32> to vector<2x8x1xf32>
    %87 = vector.broadcast %86 : vector<2x8x1xf32> to vector<2x8x8xf32>
    %88 = arith.subf %84, %87 : vector<2x8x8xf32>
    %89 = math.exp %88 : vector<2x8x8xf32>
    %cst_37 = arith.constant dense<0.000000e+00> : vector<2x8xf32>
    %90 = vector.multi_reduction <add>, %89, %cst_37 [2] : vector<2x8x8xf32> to vector<2x8xf32>
    %91 = vector.shape_cast %90 : vector<2x8xf32> to vector<2x8x1xf32>
    %92 = tpu.reciprocal %91 {approx = true} : vector<2x8x1xf32> -> vector<2x8x1xf32>
    %93 = arith.mulf %91, %92 : vector<2x8x1xf32>
    %cst_38 = arith.constant 2.000000e+00 : f32
    %94 = vector.broadcast %cst_38 : f32 to vector<2x8x1xf32>
    %95 = arith.subf %94, %93 : vector<2x8x1xf32>
    %96 = arith.mulf %92, %95 : vector<2x8x1xf32>
    %97 = vector.broadcast %96 : vector<2x8x1xf32> to vector<2x8x8xf32>
    %98 = arith.mulf %89, %97 : vector<2x8x8xf32>
    %c6 = arith.constant 6 : index
    %c0_39 = arith.constant 0 : index
    %c0_40 = arith.constant 0 : index
    %99 = vector.load %arg11[%c6, %c0_39, %c0_40] : memref<8x8x8xf32, #tpu.memory_space<vmem>>, vector<2x8x8xf32>
    tpu.vector_store %arg11[%c6, %c0_39, %c0_40], %98 {strides = array<i32>} : memref<8x8x8xf32, #tpu.memory_space<vmem>>, vector<2x8x8xf32>,
    "tpu.trace_start"() <{level = 10 : i32, message = "bqk,bkd->bqd"}> : () -> ()
    %cst_41 = arith.constant dense<0.000000e+00> : vector<2x8x8xf32>
    %100 = tpu.matmul %98, %83, %cst_41 {dimension_numbers = #tpu.dot_dimension_numbers<[2], [1], [1], [2], [0, 0, 0, 1, 1, 2], [0], [0]>} : vector<2x8x8xf32>, vector<2x8x8xf32>, vector<2x8x8xf32> -> vector<2x8x8xf32>
    "tpu.trace_stop"() : () -> ()
    %101 = tpu.concatenate %31, %54, %77, %100 in 2 : vector<2x8x8xf32>, vector<2x8x8xf32>, vector<2x8x8xf32>, vector<2x8x8xf32> -> vector<2x8x32xf32>
    %102 = vector.shape_cast %101 : vector<2x8x32xf32> to vector<16x32xf32>
    %c0_42 = arith.constant 0 : index
    %c0_43 = arith.constant 0 : index
    %103 = vector.load %arg7[%c0_42, %c0_43] : memref<32x32xf32, #tpu.memory_space<vmem>>, vector<32x32xf32>
    %cst_44 = arith.constant dense<0.000000e+00> : vector<16x32xf32>
    %104 = tpu.matmul %102, %103, %cst_44 {dimension_numbers = #tpu.dot_dimension_numbers<[1], [0], [0], [1], [0, 0, 1, 1], [], []>} : vector<16x32xf32>, vector<32x32xf32>, vector<16x32xf32> -> vector<16x32xf32>
    %105 = arith.addf %104, %0 : vector<16x32xf32>
    %cst_45 = arith.constant dense<0.000000e+00> : vector<16xf32>
    %106 = vector.multi_reduction <add>, %105, %cst_45 [1] : vector<16x32xf32> to vector<16xf32>
    %107 = vector.shape_cast %106 : vector<16xf32> to vector<16x1xf32>
    %cst_46 = arith.constant 3.200000e+01 : f32
    %108 = vector.broadcast %cst_46 : f32 to vector<16x1xf32>
    %109 = arith.divf %107, %108 : vector<16x1xf32>
    %110 = vector.broadcast %109 : vector<16x1xf32> to vector<16x32xf32>
    %111 = arith.subf %105, %110 : vector<16x32xf32>
    %112 = arith.mulf %111, %111 : vector<16x32xf32>
    %cst_47 = arith.constant dense<0.000000e+00> : vector<16xf32>
    %113 = vector.multi_reduction <add>, %112, %cst_47 [1] : vector<16x32xf32> to vector<16xf32>
    %114 = vector.shape_cast %113 : vector<16xf32> to vector<16x1xf32>
    %cst_48 = arith.constant 3.200000e+01 : f32
    %115 = vector.broadcast %cst_48 : f32 to vector<16x1xf32>
    %116 = arith.divf %114, %115 : vector<16x1xf32>
    %117 = vector.broadcast %109 : vector<16x1xf32> to vector<16x32xf32>
    %118 = arith.subf %105, %117 : vector<16x32xf32>
    %cst_49 = arith.constant 9.99999974E-6 : f32
    %119 = vector.broadcast %cst_49 : f32 to vector<16x1xf32>
    %120 = arith.addf %116, %119 : vector<16x1xf32>
    %121 = math.rsqrt %120 : vector<16x1xf32>
    %122 = vector.broadcast %121 : vector<16x1xf32> to vector<16x32xf32>
    %123 = arith.mulf %118, %122 : vector<16x32xf32>
    %c0_50 = arith.constant 0 : index
    %c0_51 = arith.constant 0 : index
    %124 = vector.load %arg8[%c0_50, %c0_51] : memref<1x32xf32, #tpu.memory_space<vmem>>, vector<1x32xf32>
    %125 = vector.broadcast %124 : vector<1x32xf32> to vector<16x32xf32>
    %126 = arith.mulf %123, %125 : vector<16x32xf32>
    %c0_52 = arith.constant 0 : index
    %c0_53 = arith.constant 0 : index
    %127 = vector.load %arg9[%c0_52, %c0_53] : memref<1x32xf32, #tpu.memory_space<vmem>>, vector<1x32xf32>
    %128 = vector.broadcast %127 : vector<1x32xf32> to vector<16x32xf32>
    %129 = arith.addf %126, %128 : vector<16x32xf32>
    %c0_54 = arith.constant 0 : index
    %c0_55 = arith.constant 0 : index
    %130 = vector.load %arg10[%c0_54, %c0_55] : memref<16x32xf32, #tpu.memory_space<vmem>>, vector<16x32xf32>
    tpu.vector_store %arg10[%c0_54, %c0_55], %129 {strides = array<i32>} : memref<16x32xf32, #tpu.memory_space<vmem>>, vector<16x32xf32>,
    return
  }
  func.func @transform_0(%arg0: i32) -> (i32, i32) {
    %c0_i32 = arith.constant 0 : i32
    %c0_i32_0 = arith.constant 0 : i32
    %c0_i32_1 = arith.constant 0 : i32
    return %c0_i32, %c0_i32_0 : i32, i32
  }
  func.func @transform_1(%arg0: i32) -> (i32, i32) {
    %c0_i32 = arith.constant 0 : i32
    %c0_i32_0 = arith.constant 0 : i32
    %c0_i32_1 = arith.constant 0 : i32
    return %c0_i32, %c0_i32_0 : i32, i32
  }
  func.func @transform_2(%arg0: i32) -> (i32, i32) {
    %c0_i32 = arith.constant 0 : i32
    %c0_i32_0 = arith.constant 0 : i32
    %c0_i32_1 = arith.constant 0 : i32
    return %c0_i32, %c0_i32_0 : i32, i32
  }
  func.func @transform_3(%arg0: i32) -> (i32, i32) {
    %c0_i32 = arith.constant 0 : i32
    %c0_i32_0 = arith.constant 0 : i32
    %c0_i32_1 = arith.constant 0 : i32
    return %c0_i32, %c0_i32_0 : i32, i32
  }
  func.func @transform_4(%arg0: i32) -> (i32, i32) {
    %c0_i32 = arith.constant 0 : i32
    %c0_i32_0 = arith.constant 0 : i32
    %c0_i32_1 = arith.constant 0 : i32
    return %c0_i32, %c0_i32_0 : i32, i32
  }
  func.func @transform_5(%arg0: i32) -> (i32, i32) {
    %c0_i32 = arith.constant 0 : i32
    %c0_i32_0 = arith.constant 0 : i32
    %c0_i32_1 = arith.constant 0 : i32
    return %c0_i32, %c0_i32_0 : i32, i32
  }
  func.func @transform_6(%arg0: i32) -> (i32, i32) {
    %c0_i32 = arith.constant 0 : i32
    %c0_i32_0 = arith.constant 0 : i32
    %c0_i32_1 = arith.constant 0 : i32
    return %c0_i32, %c0_i32_0 : i32, i32
  }
  func.func @transform_7(%arg0: i32) -> (i32, i32) {
    %c0_i32 = arith.constant 0 : i32
    %c0_i32_0 = arith.constant 0 : i32
    %c0_i32_1 = arith.constant 0 : i32
    return %c0_i32, %c0_i32_0 : i32, i32
  }
  func.func @transform_8(%arg0: i32) -> (i32, i32) {
    %c0_i32 = arith.constant 0 : i32
    %c0_i32_0 = arith.constant 0 : i32
    %c0_i32_1 = arith.constant 0 : i32
    return %c0_i32, %c0_i32_0 : i32, i32
  }
  func.func @transform_9(%arg0: i32) -> (i32, i32) {
    %c0_i32 = arith.constant 0 : i32
    %c0_i32_0 = arith.constant 0 : i32
    %c0_i32_1 = arith.constant 0 : i32
    return %c0_i32, %c0_i32_0 : i32, i32
  }
  func.func @transform_10(%arg0: i32) -> (i32, i32, i32) {
    %c0_i32 = arith.constant 0 : i32
    %c0_i32_0 = arith.constant 0 : i32
    %c0_i32_1 = arith.constant 0 : i32
    %c0_i32_2 = arith.constant 0 : i32
    return %c0_i32, %c0_i32_0, %c0_i32_1 : i32, i32, i32
  }
}

</mosaic_0001>

<llo_original>
// kernel: tpu_custom_call.1
$region0: #{tpu_custom_call.1}
  #allocation0 [shape = 'u32[]', space=smem, size = 0x4, offset = 0x4, fixed_abs, tag = 'smem constant byte address 0x4 - core index']
  #allocation1 [shape = 'u32[72,128]{1,0:T(1,128)}', space=vmem, size = 0x9000, scoped, tag = 'internal scratch']
  %s0 = inlined_call_operand.hbm [shape: f32[16,32], index: 0, kind: input, shape index: {}]
  %s1 = inlined_call_operand.hbm [shape: f32[16,32], index: 1, kind: input, shape index: {}]
  %s2 = inlined_call_operand.hbm [shape: f32[16,32], index: 2, kind: input, shape index: {}]
  %s3 = inlined_call_operand.hbm [shape: f32[32,32], index: 3, kind: input, shape index: {}]
  %s4 = inlined_call_operand.hbm [shape: f32[32,32], index: 4, kind: input, shape index: {}]
  %s5 = inlined_call_operand.hbm [shape: f32[32,32], index: 5, kind: input, shape index: {}]
  %s6 = inlined_call_operand.hbm [shape: f32[32,32], index: 6, kind: input, shape index: {}]
  %s7 = inlined_call_operand.vmem [shape: f32[1,32], index: 7, kind: input, shape index: {}]
  %s8 = inlined_call_operand.vmem [shape: f32[1,32], index: 8, kind: input, shape index: {}]
  %s9 = inlined_call_operand.hbm [shape: f32[16,32], index: 9, kind: output, shape index: {0}]
  %s10 = inlined_call_operand.hbm [shape: f32[8,8,8], index: 10, kind: output, shape index: {1}]
  %11 = xla_tuple %s9, %s10
  %s12 = sld [smem:[#allocation0]]
  $region82: #{tpu_custom_call.1} parent=0
    _
  %s14 = ssub.s32 1, %s12
  %s15 = scalar_select 0, %s14, %s12
  $region1: #{tpu_custom_call.1} parent=0
    #allocation2 [shape = 'u8[8192]{0}', space=vmem, size = 0x2000, scoped, tag = 'input window, operand 0, single buffered']
    #allocation3 [shape = 's32[1]{0}', space=sflag, size = 0x4, scoped, tag = 'scoped memory for tpu_custom_call.1']
    #allocation4 [shape = 's32[1]{0}', space=sflag, size = 0x4, scoped, tag = 'scoped memory for tpu_custom_call.1']
    #allocation5 [shape = 'u8[8192]{0}', space=vmem, size = 0x2000, scoped, tag = 'input window, operand 1, single buffered']
    #allocation6 [shape = 's32[1]{0}', space=sflag, size = 0x4, scoped, tag = 'scoped memory for tpu_custom_call.1']
    #allocation7 [shape = 'u8[8192]{0}', space=vmem, size = 0x2000, scoped, tag = 'input window, operand 2, single buffered']
    #allocation8 [shape = 'u8[16384]{0}', space=vmem, size = 0x4000, scoped, tag = 'input window, operand 3, single buffered']
    #allocation9 [shape = 's32[1]{0}', space=sflag, size = 0x4, scoped, tag = 'scoped memory for tpu_custom_call.1']
    #allocation10 [shape = 'u8[16384]{0}', space=vmem, size = 0x4000, scoped, tag = 'input window, operand 4, single buffered']
    #allocation11 [shape = 'u8[16384]{0}', space=vmem, size = 0x4000, scoped, tag = 'input window, operand 5, single buffered']
    #allocation12 [shape = 's32[1]{0}', space=sflag, size = 0x4, scoped, tag = 'scoped memory for tpu_custom_call.1']
    #allocation13 [shape = 'u8[16384]{0}', space=vmem, size = 0x4000, scoped, tag = 'input window, operand 6, single buffered']
    #allocation14 [shape = 'u8[8192]{0}', space=vmem, size = 0x2000, scoped, tag = 'output window, operand 0, single buffered']
    #allocation15 [shape = 'u8[32768]{0}', space=vmem, size = 0x8000, scoped, tag = 'output window, operand 1, single buffered']
    #allocation16 [shape = 's32[1]{0}', space=sflag, size = 0x4, scoped, tag = 'scoped memory for tpu_custom_call.1']
    %16 = vsyncpa [#allocation3], 0
    %17 = vsyncpa [#allocation6], 0
    %18 = vsyncpa [#allocation9], 0
    %19 = vsyncpa [#allocation12], 0
    %20 = vsyncpa [#allocation4], 0
    %21 = vsyncpa [#allocation16], 0
    // Predicated region
    $region2: #{tpu_custom_call.1} parent=1 // pred_check
      _
    $region3: #{tpu_custom_call.1} parent=1 // pred_check_branch
      %23 = sbr.rel (0) target = $region5
    $region4: #{tpu_custom_call.1} parent=1 // pred_region
      %25 = vsyncadd [#allocation3], 0
      %s26 = sshll.u32 %s0, 4
      %s27 = int_to_ptr.hbm [resolvable:$true] %s26
      %s28 = sshll.u32 [#allocation2], 4
      %s29 = int_to_ptr.vmem [resolvable:$true] %s28
      %34 = dma.hbm_to_vmem [thread:$0]  %s27, 256, %s29, [#allocation3], 128, 128, 8
    $region5: #{tpu_custom_call.1} parent=1 // pred_fallthru
      _
    // Predicated region
    $region6: #{tpu_custom_call.1} parent=1 // pred_check
      _
    $region7: #{tpu_custom_call.1} parent=1 // pred_check_branch
      %36 = sbr.rel (0) target = $region9
    $region8: #{tpu_custom_call.1} parent=1 // pred_region
      %38 = vsyncadd [#allocation6], 0
      %s39 = sshll.u32 %s1, 4
      %s40 = int_to_ptr.hbm [resolvable:$true] %s39
      %s41 = sshll.u32 [#allocation5], 4
      %s42 = int_to_ptr.vmem [resolvable:$true] %s41
      %47 = dma.hbm_to_vmem [thread:$0]  %s40, 256, %s42, [#allocation6], 128, 128, 8
    $region9: #{tpu_custom_call.1} parent=1 // pred_fallthru
      _
    // Predicated region
    $region10: #{tpu_custom_call.1} parent=1 // pred_check
      _
    $region11: #{tpu_custom_call.1} parent=1 // pred_check_branch
      %49 = sbr.rel (0) target = $region13
    $region12: #{tpu_custom_call.1} parent=1 // pred_region
      %51 = vsyncadd [#allocation6], 0
      %s52 = sshll.u32 %s2, 4
      %s53 = int_to_ptr.hbm [resolvable:$true] %s52
      %s54 = sshll.u32 [#allocation7], 4
      %s55 = int_to_ptr.vmem [resolvable:$true] %s54
      %60 = dma.hbm_to_vmem [thread:$0]  %s53, 256, %s55, [#allocation6], 128, 128, 8
    $region13: #{tpu_custom_call.1} parent=1 // pred_fallthru
      _
    // Predicated region
    $region14: #{tpu_custom_call.1} parent=1 // pred_check
      _
    $region15: #{tpu_custom_call.1} parent=1 // pred_check_branch
      %62 = sbr.rel (0) target = $region17
    $region16: #{tpu_custom_call.1} parent=1 // pred_region
      %64 = vsyncadd [#allocation9], 0
      %s65 = sshll.u32 %s3, 4
      %s66 = int_to_ptr.hbm [resolvable:$true] %s65
      %s67 = sshll.u32 [#allocation8], 4
      %s68 = int_to_ptr.vmem [resolvable:$true] %s67
      %73 = dma.hbm_to_vmem [thread:$0]  %s66, 512, %s68, [#allocation9], 128, 128, 8
    $region17: #{tpu_custom_call.1} parent=1 // pred_fallthru
      _
    // Predicated region
    $region18: #{tpu_custom_call.1} parent=1 // pred_check
      _
    $region19: #{tpu_custom_call.1} parent=1 // pred_check_branch
      %75 = sbr.rel (0) target = $region21
    $region20: #{tpu_custom_call.1} parent=1 // pred_region
      %77 = vsyncadd [#allocation9], 0
      %s78 = sshll.u32 %s4, 4
      %s79 = int_to_ptr.hbm [resolvable:$true] %s78
      %s80 = sshll.u32 [#allocation10], 4
      %s81 = int_to_ptr.vmem [resolvable:$true] %s80
      %86 = dma.hbm_to_vmem [thread:$0]  %s79, 512, %s81, [#allocation9], 128, 128, 8
    $region21: #{tpu_custom_call.1} parent=1 // pred_fallthru
      _
    // Predicated region
    $region22: #{tpu_custom_call.1} parent=1 // pred_check
      _
    $region23: #{tpu_custom_call.1} parent=1 // pred_check_branch
      %88 = sbr.rel (0) target = $region25
    $region24: #{tpu_custom_call.1} parent=1 // pred_region
      %90 = vsyncadd [#allocation12], 0
      %s91 = sshll.u32 %s5, 4
      %s92 = int_to_ptr.hbm [resolvable:$true] %s91
      %s93 = sshll.u32 [#allocation11], 4
      %s94 = int_to_ptr.vmem [resolvable:$true] %s93
      %99 = dma.hbm_to_vmem [thread:$0]  %s92, 512, %s94, [#allocation12], 128, 128, 8
    $region25: #{tpu_custom_call.1} parent=1 // pred_fallthru
      _
    // Predicated region
    $region26: #{tpu_custom_call.1} parent=1 // pred_check
      _
    $region27: #{tpu_custom_call.1} parent=1 // pred_check_branch
      %101 = sbr.rel (0) target = $region29
    $region28: #{tpu_custom_call.1} parent=1 // pred_region
      %103 = vsyncadd [#allocation12], 0
      %s104 = sshll.u32 %s6, 4
      %s105 = int_to_ptr.hbm [resolvable:$true] %s104
      %s106 = sshll.u32 [#allocation13], 4
      %s107 = int_to_ptr.vmem [resolvable:$true] %s106
      %112 = dma.hbm_to_vmem [thread:$0]  %s105, 512, %s107, [#allocation12], 128, 128, 8
    $region29: #{tpu_custom_call.1} parent=1 // pred_fallthru
      _
    // Predicated region
    $region30: #{tpu_custom_call.1} parent=1 // pred_check
      _
    $region31: #{tpu_custom_call.1} parent=1 // pred_check_branch
      %114 = sbr.rel (0) target = $region33
    $region32: #{tpu_custom_call.1} parent=1 // pred_region
      _
    $region33: #{tpu_custom_call.1} parent=1 // pred_fallthru
      _
    // Predicated region
    $region34: #{tpu_custom_call.1} parent=1 // pred_check
      _
    $region35: #{tpu_custom_call.1} parent=1 // pred_check_branch
      %116 = sbr.rel (0) target = $region37
    $region36: #{tpu_custom_call.1} parent=1 // pred_region
      _
    $region37: #{tpu_custom_call.1} parent=1 // pred_fallthru
      _
    // Predicated region
    $region38: #{tpu_custom_call.1} parent=1 // pred_check
      _
    $region39: #{tpu_custom_call.1} parent=1 // pred_check_branch
      %118 = sbr.rel (0) target = $region41
    $region40: #{tpu_custom_call.1} parent=1 // pred_region
      %120 = dma.done [#allocation3], 256
    $region41: #{tpu_custom_call.1} parent=1 // pred_fallthru
      _
    // Predicated region
    $region42: #{tpu_custom_call.1} parent=1 // pred_check
      _
    $region43: #{tpu_custom_call.1} parent=1 // pred_check_branch
      %122 = sbr.rel (0) target = $region45
    $region44: #{tpu_custom_call.1} parent=1 // pred_region
      %124 = dma.done [#allocation6], 256
    $region45: #{tpu_custom_call.1} parent=1 // pred_fallthru
      _
    // Predicated region
    $region46: #{tpu_custom_call.1} parent=1 // pred_check
      _
    $region47: #{tpu_custom_call.1} parent=1 // pred_check_branch
      %126 = sbr.rel (0) target = $region49
    $region48: #{tpu_custom_call.1} parent=1 // pred_region
      %128 = dma.done [#allocation6], 256
    $region49: #{tpu_custom_call.1} parent=1 // pred_fallthru
      _
    // Predicated region
    $region50: #{tpu_custom_call.1} parent=1 // pred_check
      _
    $region51: #{tpu_custom_call.1} parent=1 // pred_check_branch
      %130 = sbr.rel (0) target = $region53
    $region52: #{tpu_custom_call.1} parent=1 // pred_region
      %132 = dma.done [#allocation9], 512
    $region53: #{tpu_custom_call.1} parent=1 // pred_fallthru
      _
    // Predicated region
    $region54: #{tpu_custom_call.1} parent=1 // pred_check
      _
    $region55: #{tpu_custom_call.1} parent=1 // pred_check_branch
      %134 = sbr.rel (0) target = $region57
    $region56: #{tpu_custom_call.1} parent=1 // pred_region
      %136 = dma.done [#allocation9], 512
    $region57: #{tpu_custom_call.1} parent=1 // pred_fallthru
      _
    // Predicated region
    $region58: #{tpu_custom_call.1} parent=1 // pred_check
      _
    $region59: #{tpu_custom_call.1} parent=1 // pred_check_branch
      %138 = sbr.rel (0) target = $region61
    $region60: #{tpu_custom_call.1} parent=1 // pred_region
      %140 = dma.done [#allocation12], 512
    $region61: #{tpu_custom_call.1} parent=1 // pred_fallthru
      _
    // Predicated region
    $region62: #{tpu_custom_call.1} parent=1 // pred_check
      _
    $region63: #{tpu_custom_call.1} parent=1 // pred_check_branch
      %142 = sbr.rel (0) target = $region65
    $region64: #{tpu_custom_call.1} parent=1 // pred_region
      %144 = dma.done [#allocation12], 512
    $region65: #{tpu_custom_call.1} parent=1 // pred_fallthru
      _
    %v145 = vld [vmem:[#allocation2] sm:$0xff]
    %v146 = vld [vmem:[#allocation2 + $0x8] sm:$0xff]
    %v147 = vld [vmem:[#allocation5] sm:$0xff]
    %v148 = vld [vmem:[#allocation5 + $0x8] sm:$0xff]
    %v149 = vld [vmem:[#allocation7] sm:$0xff]
    %v150 = vld [vmem:[#allocation7 + $0x8] sm:$0xff]
    %v151 = vld [vmem:[#allocation8] sm:$0xff]
    %v152 = vld [vmem:[#allocation8 + $0x8] sm:$0xff]
    %v153 = vld [vmem:[#allocation8 + $0x10] sm:$0xff]
    %v154 = vld [vmem:[#allocation8 + $0x18] sm:$0xff]
    %vm155 = vcmask 261120
    %v157 = vsel %vm155, %v145, 0
    %v160 = vsel %vm155, %v146, 0
    %162 = vmatpush.msra.mxu0 0.0
    %163 = vmatpush.msra.mxu0 0.0
    %164 = vmatpush.msra.mxu0 0.0
    %165 = vmatpush.msra.mxu0 0.0
    %166 = vmatpush.msra.mxu0 0.0
    %167 = vmatpush.msra.mxu0 0.0
    %168 = vmatpush.msra.mxu0 0.0
    %169 = vmatpush.msra.mxu0 0.0
    %170 = vmatpush.msra.mxu0 0.0
    %171 = vmatpush.msra.mxu0 0.0
    %172 = vmatpush.msra.mxu0 0.0
    %173 = vmatpush.msra.mxu0 0.0
    %174 = vmatpush.msra.mxu0 %v154
    %175 = vmatpush.msra.mxu0 %v153
    %176 = vmatpush.msra.mxu0 %v152
    %177 = vmatpush.msra.mxu0 %v151
    %178 = vmatmul.f32.gmra.mxu0 %v157
    %v179 = vpop.f32.mrf.mxu0
    %v180 = vadd.f32 0.0, %v179
    %181 = vmatmul.f32.gmra.mxu0 %v160
    %v182 = vpop.f32.mrf.mxu0
    %v183 = vadd.f32 0.0, %v182
    %184 = vdwg.mxu0
    %v185 = vld [vmem:[#allocation10] sm:$0xff]
    %v186 = vld [vmem:[#allocation10 + $0x8] sm:$0xff]
    %v187 = vld [vmem:[#allocation10 + $0x10] sm:$0xff]
    %v188 = vld [vmem:[#allocation10 + $0x18] sm:$0xff]
    %v190 = vsel %vm155, %v147, 0
    %v193 = vsel %vm155, %v148, 0
    %195 = vmatpush.msra.mxu0 0.0
    %196 = vmatpush.msra.mxu0 0.0
    %197 = vmatpush.msra.mxu0 0.0
    %198 = vmatpush.msra.mxu0 0.0
    %199 = vmatpush.msra.mxu0 0.0
    %200 = vmatpush.msra.mxu0 0.0
    %201 = vmatpush.msra.mxu0 0.0
    %202 = vmatpush.msra.mxu0 0.0
    %203 = vmatpush.msra.mxu0 0.0
    %204 = vmatpush.msra.mxu0 0.0
    %205 = vmatpush.msra.mxu0 0.0
    %206 = vmatpush.msra.mxu0 0.0
    %207 = vmatpush.msra.mxu0 %v188
    %208 = vmatpush.msra.mxu0 %v187
    %209 = vmatpush.msra.mxu0 %v186
    %210 = vmatpush.msra.mxu0 %v185
    %211 = vmatmul.f32.gmra.mxu0 %v190
    %v212 = vpop.f32.mrf.mxu0
    %v213 = vadd.f32 0.0, %v212
    %214 = vmatmul.f32.gmra.mxu0 %v193
    %v215 = vpop.f32.mrf.mxu0
    %v216 = vadd.f32 0.0, %v215
    %217 = vdwg.mxu0
    %v218 = vld [vmem:[#allocation11] sm:$0xff]
    %v219 = vld [vmem:[#allocation11 + $0x8] sm:$0xff]
    %v220 = vld [vmem:[#allocation11 + $0x10] sm:$0xff]
    %v221 = vld [vmem:[#allocation11 + $0x18] sm:$0xff]
    %v223 = vsel %vm155, %v149, 0
    %v226 = vsel %vm155, %v150, 0
    %228 = vmatpush.msra.mxu0 0.0
    %229 = vmatpush.msra.mxu0 0.0
    %230 = vmatpush.msra.mxu0 0.0
    %231 = vmatpush.msra.mxu0 0.0
    %232 = vmatpush.msra.mxu0 0.0
    %233 = vmatpush.msra.mxu0 0.0
    %234 = vmatpush.msra.mxu0 0.0
    %235 = vmatpush.msra.mxu0 0.0
    %236 = vmatpush.msra.mxu0 0.0
    %237 = vmatpush.msra.mxu0 0.0
    %238 = vmatpush.msra.mxu0 0.0
    %239 = vmatpush.msra.mxu0 0.0
    %240 = vmatpush.msra.mxu0 %v221
    %241 = vmatpush.msra.mxu0 %v220
    %242 = vmatpush.msra.mxu0 %v219
    %243 = vmatpush.msra.mxu0 %v218
    %244 = vmatmul.f32.gmra.mxu0 %v223
    %v245 = vpop.f32.mrf.mxu0
    %v246 = vadd.f32 0.0, %v245
    %247 = vmatmul.f32.gmra.mxu0 %v226
    %v248 = vpop.f32.mrf.mxu0
    %v249 = vadd.f32 0.0, %v248
    %250 = vdwg.mxu0
    %vm251 = vcmask 64512
    %v253 = vsel %vm251, %v180, 0
    %v256 = vsel %vm251, %v213, 0
    %258 = vmatpush.xpose.msra.mxu0 0.0
    %259 = vmatpush.xpose.msra.mxu0 0.0
    %260 = vmatpush.xpose.msra.mxu0 0.0
    %261 = vmatpush.xpose.msra.mxu0 0.0
    %262 = vmatpush.xpose.msra.mxu0 0.0
    %263 = vmatpush.xpose.msra.mxu0 0.0
    %264 = vmatpush.xpose.msra.mxu0 0.0
    %265 = vmatpush.xpose.msra.mxu0 0.0
    %266 = vmatpush.xpose.msra.mxu0 0.0
    %267 = vmatpush.xpose.msra.mxu0 0.0
    %268 = vmatpush.xpose.msra.mxu0 0.0
    %269 = vmatpush.xpose.msra.mxu0 0.0
    %270 = vmatpush.xpose.msra.mxu0 0.0
    %271 = vmatpush.xpose.msra.mxu0 0.0
    %272 = vmatpush.xpose.msra.mxu0 0.0
    %273 = vmatpush.xpose.msra.mxu0 %v256
    %274 = vmatmul.f32.gmra.mxu0 %v253
    %v275 = vpop.f32.mrf.mxu0
    %v276 = vadd.f32 0.0, %v275
    %277 = vdwg.mxu0
    %v279 = vsel %vm251, %v183, 0
    %v282 = vsel %vm251, %v216, 0
    %284 = vmatpush.xpose.msra.mxu0 0.0
    %285 = vmatpush.xpose.msra.mxu0 0.0
    %286 = vmatpush.xpose.msra.mxu0 0.0
    %287 = vmatpush.xpose.msra.mxu0 0.0
    %288 = vmatpush.xpose.msra.mxu0 0.0
    %289 = vmatpush.xpose.msra.mxu0 0.0
    %290 = vmatpush.xpose.msra.mxu0 0.0
    %291 = vmatpush.xpose.msra.mxu0 0.0
    %292 = vmatpush.xpose.msra.mxu0 0.0
    %293 = vmatpush.xpose.msra.mxu0 0.0
    %294 = vmatpush.xpose.msra.mxu0 0.0
    %295 = vmatpush.xpose.msra.mxu0 0.0
    %296 = vmatpush.xpose.msra.mxu0 0.0
    %297 = vmatpush.xpose.msra.mxu0 0.0
    %298 = vmatpush.xpose.msra.mxu0 0.0
    %299 = vmatpush.xpose.msra.mxu0 %v282
    %300 = vmatmul.f32.gmra.mxu0 %v279
    %v301 = vpop.f32.mrf.mxu0
    %v302 = vadd.f32 0.0, %v301
    %303 = vdwg.mxu0
    %v304 = vsel %vm251, %v276, -inf
    %305 = vmax.xlane.f32.xlu0 %v304
    %v306 = vpop.xlane.xlu0 %305
    %v307 = vsel %vm251, %v302, -inf
    %308 = vmax.xlane.f32.xlu0 %v307
    %v309 = vpop.xlane.xlu0 %308
    %v310 = vsub.f32 %v276, %v306
    %v311 = vsub.f32 %v302, %v309
    %v312 = vmul.f32 %v310, 1.442695
    %v313 = vpow.pop %v312
    %v314 = vmul.f32 %v311, 1.442695
    %v315 = vpow.pop %v314
    %v316 = vsel %vm251, %v313, 0.0
    %317 = vadd.xlane.f32.xlu0 %v316
    %v318 = vpop.xlane.xlu0 %317
    %v319 = vsel %vm251, %v315, 0.0
    %320 = vadd.xlane.f32.xlu0 %v319
    %v321 = vpop.xlane.xlu0 %320
    %v322 = vrcp.pop %v318
    %v323 = vrcp.pop %v321
    %v324 = vmul.f32 %v318, %v322
    %v325 = vmul.f32 %v321, %v323
    %v326 = vsub.f32 2.0, %v324
    %v327 = vsub.f32 2.0, %v325
    %v328 = vmul.f32 %v322, %v326
    %v329 = vmul.f32 %v323, %v327
    %v330 = vmul.f32 %v313, %v328
    %v331 = vmul.f32 %v315, %v329
    %332 = vst.msk [vmem:[#allocation15] sm:$0xff] %vm251, %v330
    %333 = vst.msk [vmem:[#allocation15 + $0x8] sm:$0xff] %vm251, %v331
    %v335 = vsel %vm251, %v330, 0
    %337 = vmatpush.msra.mxu0 0.0
    %338 = vmatpush.msra.mxu0 0.0
    %339 = vmatpush.msra.mxu0 0.0
    %340 = vmatpush.msra.mxu0 0.0
    %341 = vmatpush.msra.mxu0 0.0
    %342 = vmatpush.msra.mxu0 0.0
    %343 = vmatpush.msra.mxu0 0.0
    %344 = vmatpush.msra.mxu0 0.0
    %345 = vmatpush.msra.mxu0 0.0
    %346 = vmatpush.msra.mxu0 0.0
    %347 = vmatpush.msra.mxu0 0.0
    %348 = vmatpush.msra.mxu0 0.0
    %349 = vmatpush.msra.mxu0 0.0
    %350 = vmatpush.msra.mxu0 0.0
    %351 = vmatpush.msra.mxu0 0.0
    %352 = vmatpush.msra.mxu0 %v246
    %353 = vmatmul.f32.gmra.mxu0 %v335
    %v354 = vpop.f32.mrf.mxu0
    %v355 = vadd.f32 0.0, %v354
    %356 = vdwg.mxu0
    %v358 = vsel %vm251, %v331, 0
    %360 = vmatpush.msra.mxu0 0.0
    %361 = vmatpush.msra.mxu0 0.0
    %362 = vmatpush.msra.mxu0 0.0
    %363 = vmatpush.msra.mxu0 0.0
    %364 = vmatpush.msra.mxu0 0.0
    %365 = vmatpush.msra.mxu0 0.0
    %366 = vmatpush.msra.mxu0 0.0
    %367 = vmatpush.msra.mxu0 0.0
    %368 = vmatpush.msra.mxu0 0.0
    %369 = vmatpush.msra.mxu0 0.0
    %370 = vmatpush.msra.mxu0 0.0
    %371 = vmatpush.msra.mxu0 0.0
    %372 = vmatpush.msra.mxu0 0.0
    %373 = vmatpush.msra.mxu0 0.0
    %374 = vmatpush.msra.mxu0 0.0
    %375 = vmatpush.msra.mxu0 %v249
    %376 = vmatmul.f32.gmra.mxu0 %v358
    %v377 = vpop.f32.mrf.mxu0
    %v378 = vadd.f32 0.0, %v377
    %379 = vdwg.mxu0
    %380 = vrot.lane.b32.xlu0 %v180, 120
    %v381 = vpop.permute.xlu0 %380
    %382 = vrot.lane.b32.xlu0 %v213, 120
    %v383 = vpop.permute.xlu0 %382
    %v384 = vsel %vm251, %v381, 0
    %v386 = vsel %vm251, %v383, 0
    %388 = vmatpush.xpose.msra.mxu0 0.0
    %389 = vmatpush.xpose.msra.mxu0 0.0
    %390 = vmatpush.xpose.msra.mxu0 0.0
    %391 = vmatpush.xpose.msra.mxu0 0.0
    %392 = vmatpush.xpose.msra.mxu0 0.0
    %393 = vmatpush.xpose.msra.mxu0 0.0
    %394 = vmatpush.xpose.msra.mxu0 0.0
    %395 = vmatpush.xpose.msra.mxu0 0.0
    %396 = vmatpush.xpose.msra.mxu0 0.0
    %397 = vmatpush.xpose.msra.mxu0 0.0
    %398 = vmatpush.xpose.msra.mxu0 0.0
    %399 = vmatpush.xpose.msra.mxu0 0.0
    %400 = vmatpush.xpose.msra.mxu0 0.0
    %401 = vmatpush.xpose.msra.mxu0 0.0
    %402 = vmatpush.xpose.msra.mxu0 0.0
    %403 = vmatpush.xpose.msra.mxu0 %v386
    %404 = vmatmul.f32.gmra.mxu0 %v384
    %v405 = vpop.f32.mrf.mxu0
    %v406 = vadd.f32 0.0, %v405
    %407 = vdwg.mxu0
    %408 = vrot.lane.b32.xlu0 %v183, 120
    %v409 = vpop.permute.xlu0 %408
    %410 = vrot.lane.b32.xlu0 %v216, 120
    %v411 = vpop.permute.xlu0 %410
    %v412 = vsel %vm251, %v409, 0
    %v414 = vsel %vm251, %v411, 0
    %416 = vmatpush.xpose.msra.mxu0 0.0
    %417 = vmatpush.xpose.msra.mxu0 0.0
    %418 = vmatpush.xpose.msra.mxu0 0.0
    %419 = vmatpush.xpose.msra.mxu0 0.0
    %420 = vmatpush.xpose.msra.mxu0 0.0
    %421 = vmatpush.xpose.msra.mxu0 0.0
    %422 = vmatpush.xpose.msra.mxu0 0.0
    %423 = vmatpush.xpose.msra.mxu0 0.0
    %424 = vmatpush.xpose.msra.mxu0 0.0
    %425 = vmatpush.xpose.msra.mxu0 0.0
    %426 = vmatpush.xpose.msra.mxu0 0.0
    %427 = vmatpush.xpose.msra.mxu0 0.0
    %428 = vmatpush.xpose.msra.mxu0 0.0
    %429 = vmatpush.xpose.msra.mxu0 0.0
    %430 = vmatpush.xpose.msra.mxu0 0.0
    %431 = vmatpush.xpose.msra.mxu0 %v414
    %432 = vmatmul.f32.gmra.mxu0 %v412
    %v433 = vpop.f32.mrf.mxu0
    %v434 = vadd.f32 0.0, %v433
    %435 = vdwg.mxu0
    %v436 = vsel %vm251, %v406, -inf
    %437 = vmax.xlane.f32.xlu0 %v436
    %v438 = vpop.xlane.xlu0 %437
    %v439 = vsel %vm251, %v434, -inf
    %440 = vmax.xlane.f32.xlu0 %v439
    %v441 = vpop.xlane.xlu0 %440
    %v442 = vsub.f32 %v406, %v438
    %v443 = vsub.f32 %v434, %v441
    %v444 = vmul.f32 %v442, 1.442695
    %v445 = vpow.pop %v444
    %v446 = vmul.f32 %v443, 1.442695
    %v447 = vpow.pop %v446
    %v448 = vsel %vm251, %v445, 0.0
    %449 = vadd.xlane.f32.xlu0 %v448
    %v450 = vpop.xlane.xlu0 %449
    %v451 = vsel %vm251, %v447, 0.0
    %452 = vadd.xlane.f32.xlu0 %v451
    %v453 = vpop.xlane.xlu0 %452
    %v454 = vrcp.pop %v450
    %v455 = vrcp.pop %v453
    %v456 = vmul.f32 %v450, %v454
    %v457 = vmul.f32 %v453, %v455
    %v458 = vsub.f32 2.0, %v456
    %v459 = vsub.f32 2.0, %v457
    %v460 = vmul.f32 %v454, %v458
    %v461 = vmul.f32 %v455, %v459
    %v462 = vmul.f32 %v445, %v460
    %v463 = vmul.f32 %v447, %v461
    %s464 = scalar_lea.vmem [#allocation15], 16
    %465 = vst.msk [vmem:[%s464] sm:$0xff] %vm251, %v462
    %466 = vst.msk [vmem:[%s464 + $0x8] sm:$0xff] %vm251, %v463
    %468 = vrot.lane.b32.xlu0 %v246, 120
    %v469 = vpop.permute.xlu0 %468
    %v472 = vsel %vm251, %v462, 0
    %474 = vmatpush.msra.mxu0 0.0
    %475 = vmatpush.msra.mxu0 0.0
    %476 = vmatpush.msra.mxu0 0.0
    %477 = vmatpush.msra.mxu0 0.0
    %478 = vmatpush.msra.mxu0 0.0
    %479 = vmatpush.msra.mxu0 0.0
    %480 = vmatpush.msra.mxu0 0.0
    %481 = vmatpush.msra.mxu0 0.0
    %482 = vmatpush.msra.mxu0 0.0
    %483 = vmatpush.msra.mxu0 0.0
    %484 = vmatpush.msra.mxu0 0.0
    %485 = vmatpush.msra.mxu0 0.0
    %486 = vmatpush.msra.mxu0 0.0
    %487 = vmatpush.msra.mxu0 0.0
    %488 = vmatpush.msra.mxu0 0.0
    %489 = vmatpush.msra.mxu0 %v469
    %490 = vmatmul.f32.gmra.mxu0 %v472
    %v491 = vpop.f32.mrf.mxu0
    %v492 = vadd.f32 0.0, %v491
    %493 = vdwg.mxu0
    %495 = vrot.lane.b32.xlu0 %v249, 120
    %v496 = vpop.permute.xlu0 %495
    %v499 = vsel %vm251, %v463, 0
    %501 = vmatpush.msra.mxu0 0.0
    %502 = vmatpush.msra.mxu0 0.0
    %503 = vmatpush.msra.mxu0 0.0
    %504 = vmatpush.msra.mxu0 0.0
    %505 = vmatpush.msra.mxu0 0.0
    %506 = vmatpush.msra.mxu0 0.0
    %507 = vmatpush.msra.mxu0 0.0
    %508 = vmatpush.msra.mxu0 0.0
    %509 = vmatpush.msra.mxu0 0.0
    %510 = vmatpush.msra.mxu0 0.0
    %511 = vmatpush.msra.mxu0 0.0
    %512 = vmatpush.msra.mxu0 0.0
    %513 = vmatpush.msra.mxu0 0.0
    %514 = vmatpush.msra.mxu0 0.0
    %515 = vmatpush.msra.mxu0 0.0
    %516 = vmatpush.msra.mxu0 %v496
    %517 = vmatmul.f32.gmra.mxu0 %v499
    %v518 = vpop.f32.mrf.mxu0
    %v519 = vadd.f32 0.0, %v518
    %520 = vdwg.mxu0
    %521 = vrot.lane.b32.xlu0 %v180, 112
    %v522 = vpop.permute.xlu0 %521
    %523 = vrot.lane.b32.xlu0 %v213, 112
    %v524 = vpop.permute.xlu0 %523
    %v525 = vsel %vm251, %v522, 0
    %v527 = vsel %vm251, %v524, 0
    %529 = vmatpush.xpose.msra.mxu0 0.0
    %530 = vmatpush.xpose.msra.mxu0 0.0
    %531 = vmatpush.xpose.msra.mxu0 0.0
    %532 = vmatpush.xpose.msra.mxu0 0.0
    %533 = vmatpush.xpose.msra.mxu0 0.0
    %534 = vmatpush.xpose.msra.mxu0 0.0
    %535 = vmatpush.xpose.msra.mxu0 0.0
    %536 = vmatpush.xpose.msra.mxu0 0.0
    %537 = vmatpush.xpose.msra.mxu0 0.0
    %538 = vmatpush.xpose.msra.mxu0 0.0
    %539 = vmatpush.xpose.msra.mxu0 0.0
    %540 = vmatpush.xpose.msra.mxu0 0.0
    %541 = vmatpush.xpose.msra.mxu0 0.0
    %542 = vmatpush.xpose.msra.mxu0 0.0
    %543 = vmatpush.xpose.msra.mxu0 0.0
    %544 = vmatpush.xpose.msra.mxu0 %v527
    %545 = vmatmul.f32.gmra.mxu0 %v525
    %v546 = vpop.f32.mrf.mxu0
    %v547 = vadd.f32 0.0, %v546
    %548 = vdwg.mxu0
    %549 = vrot.lane.b32.xlu0 %v183, 112
    %v550 = vpop.permute.xlu0 %549
    %551 = vrot.lane.b32.xlu0 %v216, 112
    %v552 = vpop.permute.xlu0 %551
    %v553 = vsel %vm251, %v550, 0
    %v555 = vsel %vm251, %v552, 0
    %557 = vmatpush.xpose.msra.mxu0 0.0
    %558 = vmatpush.xpose.msra.mxu0 0.0
    %559 = vmatpush.xpose.msra.mxu0 0.0
    %560 = vmatpush.xpose.msra.mxu0 0.0
    %561 = vmatpush.xpose.msra.mxu0 0.0
    %562 = vmatpush.xpose.msra.mxu0 0.0
    %563 = vmatpush.xpose.msra.mxu0 0.0
    %564 = vmatpush.xpose.msra.mxu0 0.0
    %565 = vmatpush.xpose.msra.mxu0 0.0
    %566 = vmatpush.xpose.msra.mxu0 0.0
    %567 = vmatpush.xpose.msra.mxu0 0.0
    %568 = vmatpush.xpose.msra.mxu0 0.0
    %569 = vmatpush.xpose.msra.mxu0 0.0
    %570 = vmatpush.xpose.msra.mxu0 0.0
    %571 = vmatpush.xpose.msra.mxu0 0.0
    %572 = vmatpush.xpose.msra.mxu0 %v555
    %573 = vmatmul.f32.gmra.mxu0 %v553
    %v574 = vpop.f32.mrf.mxu0
    %v575 = vadd.f32 0.0, %v574
    %576 = vdwg.mxu0
    %v577 = vsel %vm251, %v547, -inf
    %578 = vmax.xlane.f32.xlu0 %v577
    %v579 = vpop.xlane.xlu0 %578
    %v580 = vsel %vm251, %v575, -inf
    %581 = vmax.xlane.f32.xlu0 %v580
    %v582 = vpop.xlane.xlu0 %581
    %v583 = vsub.f32 %v547, %v579
    %v584 = vsub.f32 %v575, %v582
    %v585 = vmul.f32 %v583, 1.442695
    %v586 = vpow.pop %v585
    %v587 = vmul.f32 %v584, 1.442695
    %v588 = vpow.pop %v587
    %v589 = vsel %vm251, %v586, 0.0
    %590 = vadd.xlane.f32.xlu0 %v589
    %v591 = vpop.xlane.xlu0 %590
    %v592 = vsel %vm251, %v588, 0.0
    %593 = vadd.xlane.f32.xlu0 %v592
    %v594 = vpop.xlane.xlu0 %593
    %v595 = vrcp.pop %v591
    %v596 = vrcp.pop %v594
    %v597 = vmul.f32 %v591, %v595
    %v598 = vmul.f32 %v594, %v596
    %v599 = vsub.f32 2.0, %v597
    %v600 = vsub.f32 2.0, %v598
    %v601 = vmul.f32 %v595, %v599
    %v602 = vmul.f32 %v596, %v600
    %v603 = vmul.f32 %v586, %v601
    %v604 = vmul.f32 %v588, %v602
    %s605 = scalar_lea.vmem [#allocation15], 32
    %606 = vst.msk [vmem:[%s605] sm:$0xff] %vm251, %v603
    %607 = vst.msk [vmem:[%s605 + $0x8] sm:$0xff] %vm251, %v604
    %608 = vrot.lane.b32.xlu0 %v246, 112
    %v609 = vpop.permute.xlu0 %608
    %v612 = vsel %vm251, %v603, 0
    %614 = vmatpush.msra.mxu0 0.0
    %615 = vmatpush.msra.mxu0 0.0
    %616 = vmatpush.msra.mxu0 0.0
    %617 = vmatpush.msra.mxu0 0.0
    %618 = vmatpush.msra.mxu0 0.0
    %619 = vmatpush.msra.mxu0 0.0
    %620 = vmatpush.msra.mxu0 0.0
    %621 = vmatpush.msra.mxu0 0.0
    %622 = vmatpush.msra.mxu0 0.0
    %623 = vmatpush.msra.mxu0 0.0
    %624 = vmatpush.msra.mxu0 0.0
    %625 = vmatpush.msra.mxu0 0.0
    %626 = vmatpush.msra.mxu0 0.0
    %627 = vmatpush.msra.mxu0 0.0
    %628 = vmatpush.msra.mxu0 0.0
    %629 = vmatpush.msra.mxu0 %v609
    %630 = vmatmul.f32.gmra.mxu0 %v612
    %v631 = vpop.f32.mrf.mxu0
    %v632 = vadd.f32 0.0, %v631
    %633 = vdwg.mxu0
    %634 = vrot.lane.b32.xlu0 %v249, 112
    %v635 = vpop.permute.xlu0 %634
    %v638 = vsel %vm251, %v604, 0
    %640 = vmatpush.msra.mxu0 0.0
    %641 = vmatpush.msra.mxu0 0.0
    %642 = vmatpush.msra.mxu0 0.0
    %643 = vmatpush.msra.mxu0 0.0
    %644 = vmatpush.msra.mxu0 0.0
    %645 = vmatpush.msra.mxu0 0.0
    %646 = vmatpush.msra.mxu0 0.0
    %647 = vmatpush.msra.mxu0 0.0
    %648 = vmatpush.msra.mxu0 0.0
    %649 = vmatpush.msra.mxu0 0.0
    %650 = vmatpush.msra.mxu0 0.0
    %651 = vmatpush.msra.mxu0 0.0
    %652 = vmatpush.msra.mxu0 0.0
    %653 = vmatpush.msra.mxu0 0.0
    %654 = vmatpush.msra.mxu0 0.0
    %655 = vmatpush.msra.mxu0 %v635
    %656 = vmatmul.f32.gmra.mxu0 %v638
    %v657 = vpop.f32.mrf.mxu0
    %v658 = vadd.f32 0.0, %v657
    %659 = vdwg.mxu0
    %660 = vrot.lane.b32.xlu0 %v180, 104
    %v661 = vpop.permute.xlu0 %660
    %662 = vrot.lane.b32.xlu0 %v213, 104
    %v663 = vpop.permute.xlu0 %662
    %v664 = vsel %vm251, %v661, 0
    %v666 = vsel %vm251, %v663, 0
    %668 = vmatpush.xpose.msra.mxu0 0.0
    %669 = vmatpush.xpose.msra.mxu0 0.0
    %670 = vmatpush.xpose.msra.mxu0 0.0
    %671 = vmatpush.xpose.msra.mxu0 0.0
    %672 = vmatpush.xpose.msra.mxu0 0.0
    %673 = vmatpush.xpose.msra.mxu0 0.0
    %674 = vmatpush.xpose.msra.mxu0 0.0
    %675 = vmatpush.xpose.msra.mxu0 0.0
    %676 = vmatpush.xpose.msra.mxu0 0.0
    %677 = vmatpush.xpose.msra.mxu0 0.0
    %678 = vmatpush.xpose.msra.mxu0 0.0
    %679 = vmatpush.xpose.msra.mxu0 0.0
    %680 = vmatpush.xpose.msra.mxu0 0.0
    %681 = vmatpush.xpose.msra.mxu0 0.0
    %682 = vmatpush.xpose.msra.mxu0 0.0
    %683 = vmatpush.xpose.msra.mxu0 %v666
    %684 = vmatmul.f32.gmra.mxu0 %v664
    %v685 = vpop.f32.mrf.mxu0
    %v686 = vadd.f32 0.0, %v685
    %687 = vdwg.mxu0
    %688 = vrot.lane.b32.xlu0 %v183, 104
    %v689 = vpop.permute.xlu0 %688
    %690 = vrot.lane.b32.xlu0 %v216, 104
    %v691 = vpop.permute.xlu0 %690
    %v692 = vsel %vm251, %v689, 0
    %v694 = vsel %vm251, %v691, 0
    %696 = vmatpush.xpose.msra.mxu0 0.0
    %697 = vmatpush.xpose.msra.mxu0 0.0
    %698 = vmatpush.xpose.msra.mxu0 0.0
    %699 = vmatpush.xpose.msra.mxu0 0.0
    %700 = vmatpush.xpose.msra.mxu0 0.0
    %701 = vmatpush.xpose.msra.mxu0 0.0
    %702 = vmatpush.xpose.msra.mxu0 0.0
    %703 = vmatpush.xpose.msra.mxu0 0.0
    %704 = vmatpush.xpose.msra.mxu0 0.0
    %705 = vmatpush.xpose.msra.mxu0 0.0
    %706 = vmatpush.xpose.msra.mxu0 0.0
    %707 = vmatpush.xpose.msra.mxu0 0.0
    %708 = vmatpush.xpose.msra.mxu0 0.0
    %709 = vmatpush.xpose.msra.mxu0 0.0
    %710 = vmatpush.xpose.msra.mxu0 0.0
    %711 = vmatpush.xpose.msra.mxu0 %v694
    %712 = vmatmul.f32.gmra.mxu0 %v692
    %v713 = vpop.f32.mrf.mxu0
    %v714 = vadd.f32 0.0, %v713
    %715 = vdwg.mxu0
    %v716 = vsel %vm251, %v686, -inf
    %717 = vmax.xlane.f32.xlu0 %v716
    %v718 = vpop.xlane.xlu0 %717
    %v719 = vsel %vm251, %v714, -inf
    %720 = vmax.xlane.f32.xlu0 %v719
    %v721 = vpop.xlane.xlu0 %720
    %v722 = vsub.f32 %v686, %v718
    %v723 = vsub.f32 %v714, %v721
    %v724 = vmul.f32 %v722, 1.442695
    %v725 = vpow.pop %v724
    %v726 = vmul.f32 %v723, 1.442695
    %v727 = vpow.pop %v726
    %v728 = vsel %vm251, %v725, 0.0
    %729 = vadd.xlane.f32.xlu0 %v728
    %v730 = vpop.xlane.xlu0 %729
    %v731 = vsel %vm251, %v727, 0.0
    %732 = vadd.xlane.f32.xlu0 %v731
    %v733 = vpop.xlane.xlu0 %732
    %v734 = vrcp.pop %v730
    %v735 = vrcp.pop %v733
    %v736 = vmul.f32 %v730, %v734
    %v737 = vmul.f32 %v733, %v735
    %v738 = vsub.f32 2.0, %v736
    %v739 = vsub.f32 2.0, %v737
    %v740 = vmul.f32 %v734, %v738
    %v741 = vmul.f32 %v735, %v739
    %v742 = vmul.f32 %v725, %v740
    %v743 = vmul.f32 %v727, %v741
    %s744 = scalar_lea.vmem [#allocation15], 48
    %745 = vst.msk [vmem:[%s744] sm:$0xff] %vm251, %v742
    %746 = vst.msk [vmem:[%s744 + $0x8] sm:$0xff] %vm251, %v743
    %747 = vrot.lane.b32.xlu0 %v246, 104
    %v748 = vpop.permute.xlu0 %747
    %v751 = vsel %vm251, %v742, 0
    %753 = vmatpush.msra.mxu0 0.0
    %754 = vmatpush.msra.mxu0 0.0
    %755 = vmatpush.msra.mxu0 0.0
    %756 = vmatpush.msra.mxu0 0.0
    %757 = vmatpush.msra.mxu0 0.0
    %758 = vmatpush.msra.mxu0 0.0
    %759 = vmatpush.msra.mxu0 0.0
    %760 = vmatpush.msra.mxu0 0.0
    %761 = vmatpush.msra.mxu0 0.0
    %762 = vmatpush.msra.mxu0 0.0
    %763 = vmatpush.msra.mxu0 0.0
    %764 = vmatpush.msra.mxu0 0.0
    %765 = vmatpush.msra.mxu0 0.0
    %766 = vmatpush.msra.mxu0 0.0
    %767 = vmatpush.msra.mxu0 0.0
    %768 = vmatpush.msra.mxu0 %v748
    %769 = vmatmul.f32.gmra.mxu0 %v751
    %v770 = vpop.f32.mrf.mxu0
    %v771 = vadd.f32 0.0, %v770
    %772 = vdwg.mxu0
    %773 = vrot.lane.b32.xlu0 %v249, 104
    %v774 = vpop.permute.xlu0 %773
    %v777 = vsel %vm251, %v743, 0
    %779 = vmatpush.msra.mxu0 0.0
    %780 = vmatpush.msra.mxu0 0.0
    %781 = vmatpush.msra.mxu0 0.0
    %782 = vmatpush.msra.mxu0 0.0
    %783 = vmatpush.msra.mxu0 0.0
    %784 = vmatpush.msra.mxu0 0.0
    %785 = vmatpush.msra.mxu0 0.0
    %786 = vmatpush.msra.mxu0 0.0
    %787 = vmatpush.msra.mxu0 0.0
    %788 = vmatpush.msra.mxu0 0.0
    %789 = vmatpush.msra.mxu0 0.0
    %790 = vmatpush.msra.mxu0 0.0
    %791 = vmatpush.msra.mxu0 0.0
    %792 = vmatpush.msra.mxu0 0.0
    %793 = vmatpush.msra.mxu0 0.0
    %794 = vmatpush.msra.mxu0 %v774
    %795 = vmatmul.f32.gmra.mxu0 %v777
    %v796 = vpop.f32.mrf.mxu0
    %v797 = vadd.f32 0.0, %v796
    %798 = vdwg.mxu0
    %801 = vrot.lane.b32.xlu0 %v492, 8
    %v802 = vpop.permute.xlu0 %801
    %803 = vrot.lane.b32.xlu0 %v519, 8
    %v804 = vpop.permute.xlu0 %803
    %809 = vrot.lane.b32.xlu0 %v632, 16
    %v810 = vpop.permute.xlu0 %809
    %811 = vrot.lane.b32.xlu0 %v658, 16
    %v812 = vpop.permute.xlu0 %811
    %817 = vrot.lane.b32.xlu0 %v771, 24
    %v818 = vpop.permute.xlu0 %817
    %819 = vrot.lane.b32.xlu0 %v797, 24
    %v820 = vpop.permute.xlu0 %819
    %v823 = vsel %vm251, %v355, %v802
    %v824 = vsel %vm251, %v378, %v804
    %vm825 = vcmask 130048
    %v826 = vsel %vm825, %v823, %v810
    %v827 = vsel %vm825, %v824, %v812
    %vm828 = vcmask 195584
    %v829 = vsel %vm828, %v826, %v818
    %v830 = vsel %vm828, %v827, %v820
    %v831 = vld [vmem:[#allocation13] sm:$0xff]
    %v832 = vld [vmem:[#allocation13 + $0x8] sm:$0xff]
    %v833 = vld [vmem:[#allocation13 + $0x10] sm:$0xff]
    %v834 = vld [vmem:[#allocation13 + $0x18] sm:$0xff]
    %v836 = vsel %vm155, %v829, 0
    %v839 = vsel %vm155, %v830, 0
    %841 = vmatpush.msra.mxu0 0.0
    %842 = vmatpush.msra.mxu0 0.0
    %843 = vmatpush.msra.mxu0 0.0
    %844 = vmatpush.msra.mxu0 0.0
    %845 = vmatpush.msra.mxu0 0.0
    %846 = vmatpush.msra.mxu0 0.0
    %847 = vmatpush.msra.mxu0 0.0
    %848 = vmatpush.msra.mxu0 0.0
    %849 = vmatpush.msra.mxu0 0.0
    %850 = vmatpush.msra.mxu0 0.0
    %851 = vmatpush.msra.mxu0 0.0
    %852 = vmatpush.msra.mxu0 0.0
    %853 = vmatpush.msra.mxu0 %v834
    %854 = vmatpush.msra.mxu0 %v833
    %855 = vmatpush.msra.mxu0 %v832
    %856 = vmatpush.msra.mxu0 %v831
    %857 = vmatmul.f32.gmra.mxu0 %v836
    %v858 = vpop.f32.mrf.mxu0
    %v859 = vadd.f32 %v145, %v858
    %860 = vmatmul.f32.gmra.mxu0 %v839
    %v861 = vpop.f32.mrf.mxu0
    %v862 = vadd.f32 %v146, %v861
    %863 = vdwg.mxu0
    %v864 = vsel %vm155, %v859, 0.0
    %865 = vadd.xlane.f32.xlu0 %v864
    %v866 = vpop.xlane.xlu0 %865
    %v867 = vsel %vm155, %v862, 0.0
    %868 = vadd.xlane.f32.xlu0 %v867
    %v869 = vpop.xlane.xlu0 %868
    %v870 = vrcp.pop 32.0
    %v871 = vmul.f32 32.0, %v870
    %v872 = vsub.f32 1.0, %v871
    %v873 = vmul.f32 %v870, %v872
    %v874 = vadd.f32 %v870, %v873
    %vm875 = vweird.f32 %v870
    %v876 = vsel %vm875, %v870, %v874
    %v877 = vmul.f32 %v866, %v876
    %v878 = vmul.f32 %v869, %v876
    %v879 = vsub.f32 %v859, %v877
    %v880 = vsub.f32 %v862, %v878
    %v881 = vmul.f32 %v879, %v879
    %v882 = vmul.f32 %v880, %v880
    %v883 = vsel %vm155, %v881, 0.0
    %884 = vadd.xlane.f32.xlu0 %v883
    %v885 = vpop.xlane.xlu0 %884
    %v886 = vsel %vm155, %v882, 0.0
    %887 = vadd.xlane.f32.xlu0 %v886
    %v888 = vpop.xlane.xlu0 %887
    %v889 = vmul.f32 %v885, %v876
    %v890 = vmul.f32 %v888, %v876
    %v891 = vadd.f32 %v889, 1e-05
    %v892 = vadd.f32 %v890, 1e-05
    %v893 = vrsqrt.pop %v891
    %v894 = vmul.f32 %v893, %v891
    %v895 = vmul.f32 %v894, %v893
    %v896 = vmul.f32 0.5, %v895
    %v897 = vsub.f32 1.5, %v896
    %v898 = vmul.f32 %v893, %v897
    %vm899 = vweird.f32 %v891
    %vm900 = vweird.f32 %v893
    %vm901 = vmor %vm899, %vm900
    %v902 = vsel %vm901, %v893, %v898
    %v903 = vrsqrt.pop %v892
    %v904 = vmul.f32 %v903, %v892
    %v905 = vmul.f32 %v904, %v903
    %v906 = vmul.f32 0.5, %v905
    %v907 = vsub.f32 1.5, %v906
    %v908 = vmul.f32 %v903, %v907
    %vm909 = vweird.f32 %v892
    %vm910 = vweird.f32 %v903
    %vm911 = vmor %vm909, %vm910
    %v912 = vsel %vm911, %v903, %v908
    %v913 = vmul.f32 %v879, %v902
    %v914 = vmul.f32 %v880, %v912
    %v915 = vld [vmem:[%s7] sm:$0x1]
    %v917 = vperm.slane %v915, 0
    %v919 = vmul.f32 %v913, %v917
    %v920 = vmul.f32 %v914, %v917
    %v921 = vld [vmem:[%s8] sm:$0x1]
    %v923 = vperm.slane %v921, 0
    %v925 = vadd.f32 %v919, %v923
    %v926 = vadd.f32 %v920, %v923
    %927 = vst.msk [vmem:[#allocation14] sm:$0xff] %vm155, %v925
    %928 = vst.msk [vmem:[#allocation14 + $0x8] sm:$0xff] %vm155, %v926
    // Predicated region
    $region66: #{tpu_custom_call.1} parent=1 // pred_check
      _
    $region67: #{tpu_custom_call.1} parent=1 // pred_check_branch
      %930 = sbr.rel (0) target = $region69
    $region68: #{tpu_custom_call.1} parent=1 // pred_region
      %932 = vsyncadd [#allocation4], 0
      %s933 = sshll.u32 [#allocation14], 4
      %s934 = int_to_ptr.vmem [resolvable:$true] %s933
      %s935 = sshll.u32 %s9, 4
      %s936 = int_to_ptr.hbm [resolvable:$true] %s935
      %941 = dma.vmem_to_hbm [thread:$0]  %s934, 256, %s936, [#allocation4], 128, 128, 8
    $region69: #{tpu_custom_call.1} parent=1 // pred_fallthru
      _
    // Predicated region
    $region70: #{tpu_custom_call.1} parent=1 // pred_check
      _
    $region71: #{tpu_custom_call.1} parent=1 // pred_check_branch
      %943 = sbr.rel (0) target = $region73
    $region72: #{tpu_custom_call.1} parent=1 // pred_region
      %945 = vsyncadd [#allocation16], 0
      %s946 = sshll.u32 [#allocation15], 4
      %s947 = int_to_ptr.vmem [resolvable:$true] %s946
      %s948 = sshll.u32 %s10, 4
      %s949 = int_to_ptr.hbm [resolvable:$true] %s948
      %954 = dma.vmem_to_hbm [thread:$0]  %s947, 1024, %s949, [#allocation16], 128, 128, 8
    $region73: #{tpu_custom_call.1} parent=1 // pred_fallthru
      _
    // Predicated region
    $region74: #{tpu_custom_call.1} parent=1 // pred_check
      _
    $region75: #{tpu_custom_call.1} parent=1 // pred_check_branch
      %956 = sbr.rel (0) target = $region77
    $region76: #{tpu_custom_call.1} parent=1 // pred_region
      %958 = dma.done [#allocation4], 256
    $region77: #{tpu_custom_call.1} parent=1 // pred_fallthru
      _
    // Predicated region
    $region78: #{tpu_custom_call.1} parent=1 // pred_check
      _
    $region79: #{tpu_custom_call.1} parent=1 // pred_check_branch
      %960 = sbr.rel (0) target = $region81
    $region80: #{tpu_custom_call.1} parent=1 // pred_region
      %962 = dma.done [#allocation16], 1024
    $region81: #{tpu_custom_call.1} parent=1 // pred_fallthru
      _
    %963 = vsyncpa [#allocation3], 1
    %964 = vsyncpa [#allocation6], 1
    %965 = vsyncpa [#allocation9], 1
    %966 = vsyncpa [#allocation12], 1
    %967 = vsyncpa [#allocation4], 1
    %968 = vsyncpa [#allocation16], 1

</llo_original>
